<compile_context>
chip_gen: v5e
topology: v5e:2x2
jax: 0.10.0
libtpu: 0.0.40
codegen_flags: <defaults>
</compile_context>

<pallas_src>
import jax
import jax.numpy as jnp
from jax.experimental import pallas as pl
from jax.experimental.pallas import tpu as pltpu


def _policy_kernel(x_ref, w1_ref, b1_ref, w2d_ref, b2d_ref, out_ref):
    x = x_ref[...]                                                       # [tb, D]
    # fc1 + ReLU (MXU matmul, f32 accumulate; Hp is a full 128-lane tile).
    h = jnp.dot(x, w1_ref[...], preferred_element_type=jnp.float32) + b1_ref[...]
    h = jnp.maximum(h, 0.0)                                              # [tb, Hp]
    # 2-class softmax == sigmoid of the logit difference; the diff weights were
    # folded in the wrapper, so this is a single [tb,Hp]@[Hp,1] matvec.
    d = jnp.dot(h, w2d_ref[...], preferred_element_type=jnp.float32) + b2d_ref[...]
    p0 = jax.nn.sigmoid(d)                                               # [tb, 1], EUP
    col = jax.lax.broadcasted_iota(jnp.int32, out_ref.shape, 1)          # [tb, 2]
    out_ref[...] = jnp.where(col == 0, p0, 1.0 - p0).astype(out_ref.dtype)


def _round_up(n, m):
    return ((n + m - 1) // m) * m


def _choose_tile_b(batch, max_tile_b):
    if batch <= 1024:
        # Small batches: a single block, rounded to the 8-row sublane multiple.
        return _round_up(max(batch, 8), 8)
    # Large batches: keep >= 2 grid steps so v7x's second TensorCore gets a share
    # of the "parallel" batch axis; cap so double-buffered blocks fit VMEM on
    # every generation (x tile at 4096x32 f32 is 512 KiB, out tile ~2 MiB tiled).
    return min(max_tile_b, _round_up(pl.cdiv(batch, 2), 8))


def policy_network_forward(x, w1, b1, w2, b2, *, tile_b=None, max_tile_b=4096):
    """x: [B, D]; w1: [D, H]; b1: [1, H]; w2: [H, 2]; b2: [1, 2] -> [B, 2] probs."""
    B, D = x.shape
    H = w1.shape[1]
    O = w2.shape[1]
    assert O == 2, "kernel is specialized for the 2-action policy head"

    # Fold the 2-class softmax into a sigmoid of the logit difference:
    # softmax([l0, l1]) = [sigmoid(l0 - l1), 1 - sigmoid(l0 - l1)].
    w2d = (w2[:, 0:1] - w2[:, 1:2]).astype(jnp.float32)   # [H, 1]
    b2d = (b2[:, 0:1] - b2[:, 1:2]).astype(jnp.float32)   # [1, 1]

    # Pad hidden dim to a multiple of 128 lanes (zero padding is a no-op since
    # ReLU(0) * 0 contributes nothing). Weights are tiny; done once.
    Hp = _round_up(H, 128)
    if Hp != H:
        w1 = jnp.pad(w1, ((0, 0), (0, Hp - H)))
        b1 = jnp.pad(b1, ((0, 0), (0, Hp - H)))
        w2d = jnp.pad(w2d, ((0, Hp - H), (0, 0)))

    if tile_b is None:
        tile_b = _choose_tile_b(B, max_tile_b)
    tile_b = _round_up(tile_b, 8)
    grid = (pl.cdiv(B, tile_b),)   # ragged last block handled by Pallas masking

    out = pl.pallas_call(
        _policy_kernel,
        out_shape=jax.ShapeDtypeStruct((B, O), jnp.float32),
        grid=grid,
        in_specs=[
            pl.BlockSpec((tile_b, D), lambda i: (i, 0)),   # x: tiled over batch
            pl.BlockSpec((D, Hp), lambda i: (0, 0)),       # w1: VMEM-resident
            pl.BlockSpec((1, Hp), lambda i: (0, 0)),       # b1: VMEM-resident
            pl.BlockSpec((Hp, 1), lambda i: (0, 0)),       # w2_diff: resident
            pl.BlockSpec((1, 1), lambda i: (0, 0)),        # b2_diff: resident
        ],
        out_specs=pl.BlockSpec((tile_b, O), lambda i: (i, 0)),
        compiler_params=pltpu.CompilerParams(
            dimension_semantics=("parallel",),
            vmem_limit_bytes=32 * 1024 * 1024,
        ),
    )(x, w1, b1, w2d, b2d)
    return out


def init_params(key, input_dim, hidden_dim=64, out_dim=2):
    # Deterministic init mimicking nn.Linear's U(-1/sqrt(fan_in), 1/sqrt(fan_in)).
    k1, k2, k3, k4 = jax.random.split(key, 4)
    bound1 = 1.0 / jnp.sqrt(input_dim)
    bound2 = 1.0 / jnp.sqrt(hidden_dim)
    w1 = jax.random.uniform(k1, (input_dim, hidden_dim), jnp.float32, -bound1, bound1)
    b1 = jax.random.uniform(k2, (1, hidden_dim), jnp.float32, -bound1, bound1)
    w2 = jax.random.uniform(k3, (hidden_dim, out_dim), jnp.float32, -bound2, bound2)
    b2 = jax.random.uniform(k4, (1, out_dim), jnp.float32, -bound2, bound2)
    return w1, b1, w2, b2


def reference_forward(x, w1, b1, w2, b2):
    h = jnp.maximum(x @ w1 + b1, 0.0)
    return jax.nn.softmax(h @ w2 + b2, axis=-1)


if __name__ == "__main__":
    key = jax.random.PRNGKey(0)
    kx, kp, kx2 = jax.random.split(key, 3)

    batch, input_dim, hidden_dim = 8, 32, 64
    x = jax.random.normal(kx, (batch, input_dim), jnp.float32)
    w1, b1, w2, b2 = init_params(kp, input_dim, hidden_dim)

    # Small-batch check (single grid step).
    out = jax.block_until_ready(policy_network_forward(x, w1, b1, w2, b2))
    ref = reference_forward(x, w1, b1, w2, b2)
    assert out.shape == (batch, 2)
    assert jnp.allclose(out, ref, atol=1e-5, rtol=1e-5), "mismatch vs pure-JAX reference"
    assert jnp.allclose(jnp.sum(out, axis=-1), 1.0, atol=1e-5), "softmax rows must sum to 1"

    # Multi-step grid with a ragged final block and NO wrapper-side batch padding:
    # B=1003 with tile_b=256 -> 4 grid steps, last block has 235 valid rows.
    big_batch = 1003
    xb = jax.random.normal(kx2, (big_batch, input_dim), jnp.float32)
    out_b = jax.block_until_ready(policy_network_forward(xb, w1, b1, w2, b2, tile_b=256))
    ref_b = reference_forward(xb, w1, b1, w2, b2)
    assert out_b.shape == (big_batch, 2)
    assert jnp.allclose(out_b, ref_b, atol=1e-5, rtol=1e-5), "mismatch at ragged multi-step grid"

    # Default adaptive tile-selection path (single large block here).
    out_d = jax.block_until_ready(policy_network_forward(xb, w1, b1, w2, b2))
    assert jnp.allclose(out_d, ref_b, atol=1e-5, rtol=1e-5), "mismatch with default tile"

    print("KERNEL_OK")
</pallas_src>

<mosaic_0001>
module attributes {stable_mosaic.version = 11 : i64} {
  func.func @_policy_kernel(%arg0: i32, %arg1: memref<8x32xf32, #tpu.memory_space<vmem>>, %arg2: memref<32x128xf32, #tpu.memory_space<vmem>>, %arg3: memref<1x128xf32, #tpu.memory_space<vmem>>, %arg4: memref<128x1xf32, #tpu.memory_space<vmem>>, %arg5: memref<1x1xf32, #tpu.memory_space<vmem>>, %arg6: memref<8x2xf32, #tpu.memory_space<vmem>>) attributes {dimension_semantics = [#tpu.dimension_semantics<parallel>], iteration_bounds = array<i64: 1>, scalar_prefetch = 0 : i64, scratch_operands = 0 : i64, tpu.core_type = #tpu.core_type<tc>, window_params = [{transform_indices = @transform_0, window_bounds = array<i64: 8, 32>}, {pipeline_mode = #tpu.pipeline_mode<synchronous>, transform_indices = @transform_1, window_bounds = array<i64: 32, 128>}, {pipeline_mode = #tpu.pipeline_mode<synchronous>, transform_indices = @transform_2, window_bounds = array<i64: 1, 128>}, {pipeline_mode = #tpu.pipeline_mode<synchronous>, transform_indices = @transform_3, window_bounds = array<i64: 128, 1>}, {pipeline_mode = #tpu.pipeline_mode<synchronous>, transform_indices = @transform_4, window_bounds = array<i64: 1, 1>}, {transform_indices = @transform_5, window_bounds = array<i64: 8, 2>}]} {
    %c0 = arith.constant 0 : index
    %c0_0 = arith.constant 0 : index
    %0 = vector.load %arg1[%c0, %c0_0] : memref<8x32xf32, #tpu.memory_space<vmem>>, vector<8x32xf32>
    %c0_1 = arith.constant 0 : index
    %c0_2 = arith.constant 0 : index
    %1 = vector.load %arg2[%c0_1, %c0_2] : memref<32x128xf32, #tpu.memory_space<vmem>>, vector<32x128xf32>
    %cst = arith.constant dense<0.000000e+00> : vector<8x128xf32>
    %2 = tpu.matmul %0, %1, %cst {dimension_numbers = #tpu.dot_dimension_numbers<[1], [0], [0], [1], [0, 0, 1, 1], [], []>} : vector<8x32xf32>, vector<32x128xf32>, vector<8x128xf32> -> vector<8x128xf32>
    %c0_3 = arith.constant 0 : index
    %c0_4 = arith.constant 0 : index
    %3 = vector.load %arg3[%c0_3, %c0_4] : memref<1x128xf32, #tpu.memory_space<vmem>>, vector<1x128xf32>
    %4 = vector.broadcast %3 : vector<1x128xf32> to vector<8x128xf32>
    %5 = arith.addf %2, %4 : vector<8x128xf32>
    %cst_5 = arith.constant 0.000000e+00 : f32
    %6 = vector.broadcast %cst_5 : f32 to vector<8x128xf32>
    %7 = arith.maximumf %5, %6 : vector<8x128xf32>
    %c0_6 = arith.constant 0 : index
    %c0_7 = arith.constant 0 : index
    %8 = vector.load %arg4[%c0_6, %c0_7] : memref<128x1xf32, #tpu.memory_space<vmem>>, vector<128x1xf32>
    %cst_8 = arith.constant dense<0.000000e+00> : vector<8x1xf32>
    %9 = tpu.matmul %7, %8, %cst_8 {dimension_numbers = #tpu.dot_dimension_numbers<[1], [0], [0], [1], [0, 0, 1, 1], [], []>} : vector<8x128xf32>, vector<128x1xf32>, vector<8x1xf32> -> vector<8x1xf32>
    %c0_9 = arith.constant 0 : index
    %c0_10 = arith.constant 0 : index
    %10 = vector.load %arg5[%c0_9, %c0_10] : memref<1x1xf32, #tpu.memory_space<vmem>>, vector<1x1xf32>
    %11 = vector.broadcast %10 : vector<1x1xf32> to vector<8x1xf32>
    %12 = arith.addf %9, %11 : vector<8x1xf32>
    %13 = arith.negf %12 : vector<8x1xf32>
    %14 = math.exp %13 : vector<8x1xf32>
    %cst_11 = arith.constant 1.000000e+00 : f32
    %15 = vector.broadcast %cst_11 : f32 to vector<8x1xf32>
    %16 = arith.addf %15, %14 : vector<8x1xf32>
    %17 = arith.divf %15, %16 : vector<8x1xf32>
    %18 = tpu.iota {dimensions = array<i32: 1>} : vector<8x2xi32>
    %c0_i32 = arith.constant 0 : i32
    %19 = vector.broadcast %c0_i32 : i32 to vector<8x2xi32>
    %20 = arith.cmpi eq, %18, %19 : vector<8x2xi32>
    %cst_12 = arith.constant 1.000000e+00 : f32
    %21 = vector.broadcast %cst_12 : f32 to vector<8x1xf32>
    %22 = arith.subf %21, %17 : vector<8x1xf32>
    %23 = vector.shape_cast %17 : vector<8x1xf32> to vector<8x1xf32>
    %24 = vector.broadcast %23 : vector<8x1xf32> to vector<8x2xf32>
    %25 = vector.shape_cast %22 : vector<8x1xf32> to vector<8x1xf32>
    %26 = vector.broadcast %25 : vector<8x1xf32> to vector<8x2xf32>
    %27 = arith.select %20, %24, %26 : vector<8x2xi1>, vector<8x2xf32>
    %c0_13 = arith.constant 0 : index
    %c0_14 = arith.constant 0 : index
    %28 = vector.load %arg6[%c0_13, %c0_14] : memref<8x2xf32, #tpu.memory_space<vmem>>, vector<8x2xf32>
    tpu.vector_store %arg6[%c0_13, %c0_14], %27 {strides = array<i32>} : memref<8x2xf32, #tpu.memory_space<vmem>>, vector<8x2xf32>,
    return
  }
  func.func @transform_0(%arg0: i32) -> (i32, i32) {
    %c0_i32 = arith.constant 0 : i32
    %c0_i32_0 = arith.constant 0 : i32
    return %arg0, %c0_i32 : i32, i32
  }
  func.func @transform_1(%arg0: i32) -> (i32, i32) {
    %c0_i32 = arith.constant 0 : i32
    %c0_i32_0 = arith.constant 0 : i32
    %c0_i32_1 = arith.constant 0 : i32
    return %c0_i32, %c0_i32_0 : i32, i32
  }
  func.func @transform_2(%arg0: i32) -> (i32, i32) {
    %c0_i32 = arith.constant 0 : i32
    %c0_i32_0 = arith.constant 0 : i32
    %c0_i32_1 = arith.constant 0 : i32
    return %c0_i32, %c0_i32_0 : i32, i32
  }
  func.func @transform_3(%arg0: i32) -> (i32, i32) {
    %c0_i32 = arith.constant 0 : i32
    %c0_i32_0 = arith.constant 0 : i32
    %c0_i32_1 = arith.constant 0 : i32
    return %c0_i32, %c0_i32_0 : i32, i32
  }
  func.func @transform_4(%arg0: i32) -> (i32, i32) {
    %c0_i32 = arith.constant 0 : i32
    %c0_i32_0 = arith.constant 0 : i32
    %c0_i32_1 = arith.constant 0 : i32
    return %c0_i32, %c0_i32_0 : i32, i32
  }
  func.func @transform_5(%arg0: i32) -> (i32, i32) {
    %c0_i32 = arith.constant 0 : i32
    %c0_i32_0 = arith.constant 0 : i32
    return %arg0, %c0_i32 : i32, i32
  }
}

</mosaic_0001>

<llo_original>
// kernel: tpu_custom_call.1
$region0: #{tpu_custom_call.1}
  #allocation0 [shape = 'u32[]', space=smem, size = 0x4, offset = 0x4, fixed_abs, tag = 'smem constant byte address 0x4 - core index']
  #allocation1 [shape = 'u32[72,128]{1,0:T(1,128)}', space=vmem, size = 0x9000, scoped, tag = 'internal scratch']
  #allocation2 [shape = 'f32[1,1]{1,0:T(1,128)S(1)}', space=vmem, size = 0x200, scoped, tag = 'scoped memory for tpu_custom_call.1']
  %s0 = inlined_call_operand.vmem [shape: f32[8,32], index: 0, kind: input, shape index: {}]
  %s1 = inlined_call_operand.vmem [shape: f32[32,128], index: 1, kind: input, shape index: {}]
  %s2 = inlined_call_operand.vmem [shape: f32[1,128], index: 2, kind: input, shape index: {}]
  %s3 = inlined_call_operand.vmem [shape: f32[128,1], index: 3, kind: input, shape index: {}]
  %s4 = inlined_call_operand.<no memory space> [shape: f32[1,1], index: 4, kind: input, shape index: {}]
  %s5 = inlined_call_operand.vmem [shape: f32[8,2], index: 5, kind: output, shape index: {}]
  %s6 = sld [smem:[#allocation0]]
  $region30: #{tpu_custom_call.1} parent=0
    _
  %s8 = ssub.s32 1, %s6
  %s9 = scalar_select 0, %s8, %s6
  %v10 = vstv %s4
  %11 = vst [vmem:[#allocation2] sm:$0x1] %v10
  // Predicated region
  $region2: #{tpu_custom_call.1} parent=0 // pred_check
    _
  $region3: #{tpu_custom_call.1} parent=0 // pred_check_branch
    %13 = sbr.rel (0) target = $region5
  $region4: #{tpu_custom_call.1} parent=0 // pred_region
    _
  $region5: #{tpu_custom_call.1} parent=0 // pred_fallthru
    _
  // Predicated region
  $region6: #{tpu_custom_call.1} parent=0 // pred_check
    _
  $region7: #{tpu_custom_call.1} parent=0 // pred_check_branch
    %15 = sbr.rel (0) target = $region9
  $region8: #{tpu_custom_call.1} parent=0 // pred_region
    _
  $region9: #{tpu_custom_call.1} parent=0 // pred_fallthru
    _
  // Predicated region
  $region10: #{tpu_custom_call.1} parent=0 // pred_check
    _
  $region11: #{tpu_custom_call.1} parent=0 // pred_check_branch
    %17 = sbr.rel (0) target = $region13
  $region12: #{tpu_custom_call.1} parent=0 // pred_region
    _
  $region13: #{tpu_custom_call.1} parent=0 // pred_fallthru
    _
  // Predicated region
  $region14: #{tpu_custom_call.1} parent=0 // pred_check
    _
  $region15: #{tpu_custom_call.1} parent=0 // pred_check_branch
    %19 = sbr.rel (0) target = $region17
  $region16: #{tpu_custom_call.1} parent=0 // pred_region
    _
  $region17: #{tpu_custom_call.1} parent=0 // pred_fallthru
    _
  // Predicated region
  $region18: #{tpu_custom_call.1} parent=0 // pred_check
    _
  $region19: #{tpu_custom_call.1} parent=0 // pred_check_branch
    %21 = sbr.rel (0) target = $region21
  $region20: #{tpu_custom_call.1} parent=0 // pred_region
    _
  $region21: #{tpu_custom_call.1} parent=0 // pred_fallthru
    _
  %v22 = vld [vmem:[%s0] sm:$0xff]
  %v23 = vld [vmem:[%s1] sm:$0xff]
  %v24 = vld [vmem:[%s1 + $0x8] sm:$0xff]
  %v25 = vld [vmem:[%s1 + $0x10] sm:$0xff]
  %v26 = vld [vmem:[%s1 + $0x18] sm:$0xff]
  %v27 = vld [vmem:[%s2] sm:$0x1]
  %v29 = vperm.slane %v27, 0
  %vm31 = vcmask 261120
  %v33 = vsel %vm31, %v22, 0
  %35 = vmatpush.msra.mxu0 0.0
  %36 = vmatpush.msra.mxu0 0.0
  %37 = vmatpush.msra.mxu0 0.0
  %38 = vmatpush.msra.mxu0 0.0
  %39 = vmatpush.msra.mxu0 0.0
  %40 = vmatpush.msra.mxu0 0.0
  %41 = vmatpush.msra.mxu0 0.0
  %42 = vmatpush.msra.mxu0 0.0
  %43 = vmatpush.msra.mxu0 0.0
  %44 = vmatpush.msra.mxu0 0.0
  %45 = vmatpush.msra.mxu0 0.0
  %46 = vmatpush.msra.mxu0 0.0
  %47 = vmatpush.msra.mxu0 %v26
  %48 = vmatpush.msra.mxu0 %v25
  %49 = vmatpush.msra.mxu0 %v24
  %50 = vmatpush.msra.mxu0 %v23
  %51 = vmatmul.f32.gmra.mxu0 %v33
  %v52 = vpop.f32.mrf.mxu0
  %v53 = vadd.f32 %v29, %v52
  %54 = vdwg.mxu0
  %v55 = vmax.f32 %v53, 0.0
  %v56 = vld [vmem:[%s3] sm:$0xff]
  %v57 = vld [vmem:[%s3 + $0x8] sm:$0xff]
  %v58 = vld [vmem:[%s3 + $0x10] sm:$0xff]
  %v59 = vld [vmem:[%s3 + $0x18] sm:$0xff]
  %v60 = vld [vmem:[%s3 + $0x20] sm:$0xff]
  %v61 = vld [vmem:[%s3 + $0x28] sm:$0xff]
  %v62 = vld [vmem:[%s3 + $0x30] sm:$0xff]
  %v63 = vld [vmem:[%s3 + $0x38] sm:$0xff]
  %v64 = vld [vmem:[%s3 + $0x40] sm:$0xff]
  %v65 = vld [vmem:[%s3 + $0x48] sm:$0xff]
  %v66 = vld [vmem:[%s3 + $0x50] sm:$0xff]
  %v67 = vld [vmem:[%s3 + $0x58] sm:$0xff]
  %v68 = vld [vmem:[%s3 + $0x60] sm:$0xff]
  %v69 = vld [vmem:[%s3 + $0x68] sm:$0xff]
  %v70 = vld [vmem:[%s3 + $0x70] sm:$0xff]
  %v71 = vld [vmem:[%s3 + $0x78] sm:$0xff]
  %v72 = vld [vmem:[#allocation2] sm:$0x1]
  %v74 = vperm.slane %v72, 0
  %76 = vmatpush.msra.mxu0 %v71
  %77 = vmatpush.msra.mxu0 %v70
  %78 = vmatpush.msra.mxu0 %v69
  %79 = vmatpush.msra.mxu0 %v68
  %80 = vmatpush.msra.mxu0 %v67
  %81 = vmatpush.msra.mxu0 %v66
  %82 = vmatpush.msra.mxu0 %v65
  %83 = vmatpush.msra.mxu0 %v64
  %84 = vmatpush.msra.mxu0 %v63
  %85 = vmatpush.msra.mxu0 %v62
  %86 = vmatpush.msra.mxu0 %v61
  %87 = vmatpush.msra.mxu0 %v60
  %88 = vmatpush.msra.mxu0 %v59
  %89 = vmatpush.msra.mxu0 %v58
  %90 = vmatpush.msra.mxu0 %v57
  %91 = vmatpush.msra.mxu0 %v56
  %92 = vmatmul.f32.gmra.mxu0 %v55
  %v93 = vpop.f32.mrf.mxu0
  %v94 = vadd.f32 %v74, %v93
  %95 = vdwg.mxu0
  %v96 = vxor.u32 %v94, 2147483648
  %v97 = vmul.f32 %v96, 1.442695
  %v98 = vpow.pop %v97
  %v99 = vadd.f32 %v98, 1.0
  %v100 = vrcp.pop %v99
  %v101 = vmul.f32 %v99, %v100
  %v102 = vsub.f32 1.0, %v101
  %v103 = vmul.f32 %v100, %v102
  %v104 = vadd.f32 %v100, %v103
  %vm105 = vweird.f32 %v99
  %vm106 = vweird.f32 %v100
  %vm107 = vmor %vm105, %vm106
  %v108 = vsel %vm107, %v100, %v104
  %v109 = vand.u32 2147483647, %v99
  %vm110 = vcmp.eq.f32.partialorder %v109, 8.507059e+37
  %v111 = vand.u32 %v99, 2147483648
  %v112 = vor.u32 1.1754944e-38, %v111
  %v113 = vsel %vm110, %v112, %v108
  %v114 = vmul.f32 1.0, %v113
  %v115 = vlaneseq
  %v116 = vand.u32 %v115, 127
  %vm117 = vcmp.eq.s32.totalorder %v116, 0
  %v118 = vsub.f32 1.0, %v114
  %120 = vset.pattern.permute.xlu0 0
  %121 = vperm.xlu0 %120, %v114
  %v122 = vpop.permute.xlu0 %121
  %125 = vset.pattern.permute.xlu0 0
  %126 = vperm.xlu0 %125, %v118
  %v127 = vpop.permute.xlu0 %126
  %v129 = vsel %vm117, %v122, %v127
  %vm130 = vcmask 15360
  %131 = vst.msk [vmem:[%s5] sm:$0xff] %vm130, %v129
  // Predicated region
  $region22: #{tpu_custom_call.1} parent=0 // pred_check
    _
  $region23: #{tpu_custom_call.1} parent=0 // pred_check_branch
    %133 = sbr.rel (0) target = $region25
  $region24: #{tpu_custom_call.1} parent=0 // pred_region
    _
  $region25: #{tpu_custom_call.1} parent=0 // pred_fallthru
    _
  // Predicated region
  $region26: #{tpu_custom_call.1} parent=0 // pred_check
    _
  $region27: #{tpu_custom_call.1} parent=0 // pred_check_branch
    %135 = sbr.rel (0) target = $region29
  $region28: #{tpu_custom_call.1} parent=0 // pred_region
    _
  $region29: #{tpu_custom_call.1} parent=0 // pred_fallthru
    _

</llo_original>
